<compile_context>
chip_gen: v7x
topology: tpu7x:2x2x1
jax: 0.10.0
libtpu: 0.0.40
codegen_flags: <defaults>
</compile_context>

<pallas_src>
import functools

import jax
import jax.numpy as jnp
from jax.experimental import pallas as pl
from jax.experimental.pallas import tpu as pltpu


# ----------------------------------------------------------------------------
# Kernel
# ----------------------------------------------------------------------------
def lang_disc_kernel(x_ref, w1_ref, b1_ref, w2_ref, b2_ref, w3_ref, b3_ref,
                     o_ref, acc_ref, *, inv_seq_len, n_sub):
    s = pl.program_id(1)

    # ---- init the f32 accumulator at the first S tile ----------------------
    @pl.when(s == 0)
    def _init():
        acc_ref[...] = jnp.zeros_like(acc_ref)

    # ---- streamed partial sum over this S tile ------------------------------
    # Fold the tile to (tb, ts/n_sub, n_sub, H) and reduce over axis=1: the
    # (n_sub, H) minor dims keep the native (sublane, lane) layout, so this is
    # pure VALU vreg adds (no per-step XLU cross-sublane reduce). f32 accum.
    tb, ts, h = x_ref.shape
    x = x_ref[...].astype(jnp.float32)
    # TODO(synk): for bf16/int8 inputs, verify via pl.lower_as_mlir that the
    # cast fuses into the reduce instead of materializing an f32 tile.
    acc_ref[...] += jnp.sum(x.reshape(tb, ts // n_sub, n_sub, h), axis=1)

    # ---- finalize: mean + 2x (Linear+ReLU) + Linear(H,1), once per B tile ---
    @pl.when(s == pl.num_programs(1) - 1)
    def _finalize():
        m = jnp.sum(acc_ref[...], axis=1) * inv_seq_len           # (tb, H)
        h1 = jnp.dot(m, w1_ref[...],
                     preferred_element_type=jnp.float32) + b1_ref[...]
        h1 = jnp.maximum(h1, 0.0)
        h2 = jnp.dot(h1, w2_ref[...],
                     preferred_element_type=jnp.float32) + b2_ref[...]
        h2 = jnp.maximum(h2, 0.0)
        # Linear(H, 1): N=1 is pathological for the MXU -> VPU mul + lane
        # reduce against w3 stored host-side as a (1, H) row.
        out = jnp.sum(h2 * w3_ref[...], axis=-1, keepdims=True) + b3_ref[...]
        o_ref[...] = out.astype(o_ref.dtype)


# ----------------------------------------------------------------------------
# Tile selection (jointly budgets tb and ts against the x-tile byte budget)
# ----------------------------------------------------------------------------
def _largest_divisor(n, upper, mult):
    """Largest divisor of n that is <= upper and a multiple of `mult`; 0 if none."""
    upper = min(n, upper)
    d = (upper // mult) * mult
    while d >= mult:
        if n % d == 0:
            return d
        d -= mult
    return 0


def _pick_tiles(B, S, H, itemsize, x_budget):
    # Sub-32-bit dtypes pack along sublanes: keep ts a multiple of the packed
    # sublane tile (8 for f32, 16 for bf16, 32 for int8/fp8).
    sub = max(8, 32 // max(1, itemsize))

    # Candidate batch tiles: divisors of B that are multiples of 8, desc.
    tb_cands = [d for d in range(8 * (B // 8), 0, -8) if B % d == 0]
    if B >= 16 and any(d <= B // 2 for d in tb_cands):
        # v7x: keep >= 2 batch blocks so the "parallel" axis shards across
        # both TensorCores (harmless on single-TC v5e/v6e).
        tb_cands = [d for d in tb_cands if d <= B // 2]
    tb_cands = [d for d in tb_cands if d <= 256] or ([min(tb_cands)] if tb_cands else [])
    tb_cands = tb_cands or [B]          # tiny / awkward B: full batch block

    for tb in tb_cands:
        row_bytes = tb * H * itemsize
        ts_target = max(1, x_budget // max(1, row_bytes))
        for mult in (sub, 8):
            ts = _largest_divisor(S, max(mult, ts_target), mult)
            if ts and ts * row_bytes <= 2 * x_budget:
                return tb, ts
        # Full-S fallback (exempt from the (8,128) rule) only within ~2x budget.
        if S * row_bytes <= 2 * x_budget:
            return tb, S

    # TODO(synk): masked remainder tiles for awkward (B, S) combinations.
    return tb_cands[-1], S


# ----------------------------------------------------------------------------
# Wrapper
# ----------------------------------------------------------------------------
def lang_discriminator(x, params, *, x_tile_bytes=8 << 20):
    """x: (B, S, H). params: dict of w1,b1,w2,b2,w3,b3."""
    B, S, H = x.shape
    itemsize = x.dtype.itemsize
    w1, b1 = params["w1"], params["b1"]
    w2, b2 = params["w2"], params["b2"]
    w3, b3 = params["w3"], params["b3"]
    w3_row = w3.reshape(1, H)          # (H, 1) -> (1, H) for the lane reduce
    b3 = b3.reshape(1, 1)

    # --- joint tb / ts selection against the x-tile byte budget -------------
    tb, ts = _pick_tiles(B, S, H, itemsize, x_tile_bytes)
    n_sub = 8 if ts % 8 == 0 else 1
    grid = (B // tb, S // ts)

    # --- explicit VMEM budget: 2x streamed x tile + double-buffered resident
    #     weights/biases + fat accumulator + output, plus slack. Cap at 64 MiB
    #     so the limit is also valid on v7x (64 MiB physical per TC).
    weight_bytes = (w1.nbytes + b1.nbytes + w2.nbytes + b2.nbytes
                    + w3_row.nbytes + b3.nbytes)
    x_stream_bytes = 2 * tb * ts * H * itemsize
    acc_bytes = tb * n_sub * H * 4
    out_bytes = 2 * tb * 4
    vmem_limit = x_stream_bytes + 2 * weight_bytes + acc_bytes + out_bytes + (4 << 20)
    vmem_limit = int(min(max(vmem_limit, 32 << 20), 64 << 20))

    # --- cost estimate: this call is HBM-bound on reading x -----------------
    flops = B * S * H + 2 * (2 * B * H * H) + 2 * B * H + 4 * B * H
    bytes_accessed = x.size * itemsize + weight_bytes + B * 4
    cost = pl.CostEstimate(flops=flops, transcendentals=0,
                           bytes_accessed=bytes_accessed)

    const = lambda b, s: (0, 0)
    kern = functools.partial(lang_disc_kernel, inv_seq_len=1.0 / S, n_sub=n_sub)

    return pl.pallas_call(
        kern,
        out_shape=jax.ShapeDtypeStruct((B, 1), jnp.float32),
        grid_spec=pltpu.PrefetchScalarGridSpec(
            num_scalar_prefetch=0,
            grid=grid,
            in_specs=[
                pl.BlockSpec((tb, ts, H), lambda b, s: (b, s, 0)),  # x (streamed)
                pl.BlockSpec((H, H), const),                        # w1 (resident)
                pl.BlockSpec((1, H), const),                        # b1
                pl.BlockSpec((H, H), const),                        # w2
                pl.BlockSpec((1, H), const),                        # b2
                pl.BlockSpec((1, H), const),                        # w3 row
                pl.BlockSpec((1, 1), const),                        # b3
            ],
            out_specs=pl.BlockSpec((tb, 1), lambda b, s: (b, 0)),
            scratch_shapes=[pltpu.VMEM((tb, n_sub, H), jnp.float32)],
        ),
        compiler_params=pltpu.CompilerParams(
            dimension_semantics=("parallel", "arbitrary"),
            vmem_limit_bytes=vmem_limit,
        ),
        cost_estimate=cost,
    )(x, w1, b1, w2, b2, w3_row, b3)


# ----------------------------------------------------------------------------
# Params / reference / test
# ----------------------------------------------------------------------------
def init_params(key, hidden_size):
    """Deterministic init mimicking nn.Linear's U(-1/sqrt(fan_in), +...)."""
    ks = jax.random.split(key, 6)
    lim = 1.0 / jnp.sqrt(hidden_size)

    def u(k, shape):
        return jax.random.uniform(k, shape, jnp.float32, -lim, lim)

    return {
        "w1": u(ks[0], (hidden_size, hidden_size)),
        "b1": u(ks[1], (1, hidden_size)),
        "w2": u(ks[2], (hidden_size, hidden_size)),
        "b2": u(ks[3], (1, hidden_size)),
        "w3": u(ks[4], (hidden_size, 1)),
        "b3": u(ks[5], (1, 1)),
    }


def reference(x, p):
    m = jnp.mean(x.astype(jnp.float32), axis=1)
    h = jnp.maximum(m @ p["w1"] + p["b1"], 0.0)
    h = jnp.maximum(h @ p["w2"] + p["b2"], 0.0)
    return h @ p["w3"] + p["b3"]


if __name__ == "__main__":
    B, S, H = 2, 8, 32
    key = jax.random.PRNGKey(0)
    kx, kp = jax.random.split(key)
    x = jax.random.normal(kx, (B, S, H), jnp.float32)
    params = init_params(kp, H)

    out = lang_discriminator(x, params)
    out = jax.block_until_ready(out)

    ref = reference(x, params)
    assert out.shape == (B, 1), out.shape
    assert jnp.allclose(out, ref, atol=1e-5, rtol=1e-5), (out, ref)
    print("KERNEL_OK")
</pallas_src>

<mosaic_0001>
module attributes {stable_mosaic.version = 11 : i64} {
  func.func @lang_disc_kernel(%arg0: i32, %arg1: i32, %arg2: memref<2x8x32xf32, #tpu.memory_space<vmem>>, %arg3: memref<32x32xf32, #tpu.memory_space<vmem>>, %arg4: memref<1x32xf32, #tpu.memory_space<vmem>>, %arg5: memref<32x32xf32, #tpu.memory_space<vmem>>, %arg6: memref<1x32xf32, #tpu.memory_space<vmem>>, %arg7: memref<1x32xf32, #tpu.memory_space<vmem>>, %arg8: memref<1x1xf32, #tpu.memory_space<vmem>>, %arg9: memref<2x1xf32, #tpu.memory_space<vmem>>, %arg10: memref<2x8x32xf32, #tpu.memory_space<vmem>>) attributes {dimension_semantics = [#tpu.dimension_semantics<parallel>, #tpu.dimension_semantics<arbitrary>], iteration_bounds = array<i64: 1, 1>, scalar_prefetch = 0 : i64, scratch_operands = 1 : i64, tpu.core_type = #tpu.core_type<tc>, window_params = [{transform_indices = @transform_0, window_bounds = array<i64: 2, 8, 32>}, {pipeline_mode = #tpu.pipeline_mode<synchronous>, transform_indices = @transform_1, window_bounds = array<i64: 32, 32>}, {pipeline_mode = #tpu.pipeline_mode<synchronous>, transform_indices = @transform_2, window_bounds = array<i64: 1, 32>}, {pipeline_mode = #tpu.pipeline_mode<synchronous>, transform_indices = @transform_3, window_bounds = array<i64: 32, 32>}, {pipeline_mode = #tpu.pipeline_mode<synchronous>, transform_indices = @transform_4, window_bounds = array<i64: 1, 32>}, {pipeline_mode = #tpu.pipeline_mode<synchronous>, transform_indices = @transform_5, window_bounds = array<i64: 1, 32>}, {pipeline_mode = #tpu.pipeline_mode<synchronous>, transform_indices = @transform_6, window_bounds = array<i64: 1, 1>}, {transform_indices = @transform_7, window_bounds = array<i64: 2, 1>}]} {
    %c0_i32 = arith.constant 0 : i32
    %0 = arith.cmpi eq, %arg1, %c0_i32 : i32
    %1 = arith.extui %0 : i1 to i32
    %c0_i32_0 = arith.constant 0 : i32
    %2 = arith.cmpi ne, %1, %c0_i32_0 : i32
    scf.if %2 {
      %cst_11 = arith.constant 0.000000e+00 : f32
      %12 = vector.broadcast %cst_11 : f32 to vector<2x8x32xf32>
      %c0_12 = arith.constant 0 : index
      %c0_13 = arith.constant 0 : index
      %c0_14 = arith.constant 0 : index
      %13 = vector.load %arg10[%c0_12, %c0_13, %c0_14] : memref<2x8x32xf32, #tpu.memory_space<vmem>>, vector<2x8x32xf32>
      tpu.vector_store %arg10[%c0_12, %c0_13, %c0_14], %12 {strides = array<i32>} : memref<2x8x32xf32, #tpu.memory_space<vmem>>, vector<2x8x32xf32>,
    } else {
    }
    %c0 = arith.constant 0 : index
    %c0_1 = arith.constant 0 : index
    %c0_2 = arith.constant 0 : index
    %3 = vector.load %arg2[%c0, %c0_1, %c0_2] : memref<2x8x32xf32, #tpu.memory_space<vmem>>, vector<2x8x32xf32>
    %c0_3 = arith.constant 0 : index
    %c0_4 = arith.constant 0 : index
    %c0_5 = arith.constant 0 : index
    %4 = vector.load %arg10[%c0_3, %c0_4, %c0_5] : memref<2x8x32xf32, #tpu.memory_space<vmem>>, vector<2x8x32xf32>
    %5 = vector.shape_cast %3 : vector<2x8x32xf32> to vector<2x1x8x32xf32>
    %cst = arith.constant dense<0.000000e+00> : vector<2x8x32xf32>
    %6 = vector.multi_reduction <add>, %5, %cst [1] : vector<2x1x8x32xf32> to vector<2x8x32xf32>
    %7 = arith.addf %4, %6 : vector<2x8x32xf32>
    %c0_6 = arith.constant 0 : index
    %c0_7 = arith.constant 0 : index
    %c0_8 = arith.constant 0 : index
    %8 = vector.load %arg10[%c0_6, %c0_7, %c0_8] : memref<2x8x32xf32, #tpu.memory_space<vmem>>, vector<2x8x32xf32>
    tpu.vector_store %arg10[%c0_6, %c0_7, %c0_8], %7 {strides = array<i32>} : memref<2x8x32xf32, #tpu.memory_space<vmem>>, vector<2x8x32xf32>,
    %c0_i32_9 = arith.constant 0 : i32
    %9 = arith.cmpi eq, %arg1, %c0_i32_9 : i32
    %10 = arith.extui %9 : i1 to i32
    %c0_i32_10 = arith.constant 0 : i32
    %11 = arith.cmpi ne, %10, %c0_i32_10 : i32
    scf.if %11 {
      %c0_11 = arith.constant 0 : index
      %c0_12 = arith.constant 0 : index
      %c0_13 = arith.constant 0 : index
      %12 = vector.load %arg10[%c0_11, %c0_12, %c0_13] : memref<2x8x32xf32, #tpu.memory_space<vmem>>, vector<2x8x32xf32>
      %cst_14 = arith.constant dense<0.000000e+00> : vector<2x32xf32>
      %13 = vector.multi_reduction <add>, %12, %cst_14 [1] : vector<2x8x32xf32> to vector<2x32xf32>
      %cst_15 = arith.constant 1.250000e-01 : f32
      %14 = vector.broadcast %cst_15 : f32 to vector<2x32xf32>
      %15 = arith.mulf %13, %14 : vector<2x32xf32>
      %c0_16 = arith.constant 0 : index
      %c0_17 = arith.constant 0 : index
      %16 = vector.load %arg3[%c0_16, %c0_17] : memref<32x32xf32, #tpu.memory_space<vmem>>, vector<32x32xf32>
      %cst_18 = arith.constant dense<0.000000e+00> : vector<2x32xf32>
      %17 = tpu.matmul %15, %16, %cst_18 {dimension_numbers = #tpu.dot_dimension_numbers<[1], [0], [0], [1], [0, 0, 1, 1], [], []>} : vector<2x32xf32>, vector<32x32xf32>, vector<2x32xf32> -> vector<2x32xf32>
      %c0_19 = arith.constant 0 : index
      %c0_20 = arith.constant 0 : index
      %18 = vector.load %arg4[%c0_19, %c0_20] : memref<1x32xf32, #tpu.memory_space<vmem>>, vector<1x32xf32>
      %19 = vector.broadcast %18 : vector<1x32xf32> to vector<2x32xf32>
      %20 = arith.addf %17, %19 : vector<2x32xf32>
      %cst_21 = arith.constant 0.000000e+00 : f32
      %21 = vector.broadcast %cst_21 : f32 to vector<2x32xf32>
      %22 = arith.maximumf %20, %21 : vector<2x32xf32>
      %c0_22 = arith.constant 0 : index
      %c0_23 = arith.constant 0 : index
      %23 = vector.load %arg5[%c0_22, %c0_23] : memref<32x32xf32, #tpu.memory_space<vmem>>, vector<32x32xf32>
      %cst_24 = arith.constant dense<0.000000e+00> : vector<2x32xf32>
      %24 = tpu.matmul %22, %23, %cst_24 {dimension_numbers = #tpu.dot_dimension_numbers<[1], [0], [0], [1], [0, 0, 1, 1], [], []>} : vector<2x32xf32>, vector<32x32xf32>, vector<2x32xf32> -> vector<2x32xf32>
      %c0_25 = arith.constant 0 : index
      %c0_26 = arith.constant 0 : index
      %25 = vector.load %arg6[%c0_25, %c0_26] : memref<1x32xf32, #tpu.memory_space<vmem>>, vector<1x32xf32>
      %26 = vector.broadcast %25 : vector<1x32xf32> to vector<2x32xf32>
      %27 = arith.addf %24, %26 : vector<2x32xf32>
      %cst_27 = arith.constant 0.000000e+00 : f32
      %28 = vector.broadcast %cst_27 : f32 to vector<2x32xf32>
      %29 = arith.maximumf %27, %28 : vector<2x32xf32>
      %c0_28 = arith.constant 0 : index
      %c0_29 = arith.constant 0 : index
      %30 = vector.load %arg7[%c0_28, %c0_29] : memref<1x32xf32, #tpu.memory_space<vmem>>, vector<1x32xf32>
      %31 = vector.broadcast %30 : vector<1x32xf32> to vector<2x32xf32>
      %32 = arith.mulf %29, %31 : vector<2x32xf32>
      %cst_30 = arith.constant dense<0.000000e+00> : vector<2xf32>
      %33 = vector.multi_reduction <add>, %32, %cst_30 [1] : vector<2x32xf32> to vector<2xf32>
      %34 = vector.shape_cast %33 : vector<2xf32> to vector<2x1xf32>
      %c0_31 = arith.constant 0 : index
      %c0_32 = arith.constant 0 : index
      %35 = vector.load %arg8[%c0_31, %c0_32] : memref<1x1xf32, #tpu.memory_space<vmem>>, vector<1x1xf32>
      %36 = vector.broadcast %35 : vector<1x1xf32> to vector<2x1xf32>
      %37 = arith.addf %34, %36 : vector<2x1xf32>
      %c0_33 = arith.constant 0 : index
      %c0_34 = arith.constant 0 : index
      %38 = vector.load %arg9[%c0_33, %c0_34] : memref<2x1xf32, #tpu.memory_space<vmem>>, vector<2x1xf32>
      tpu.vector_store %arg9[%c0_33, %c0_34], %37 {strides = array<i32>} : memref<2x1xf32, #tpu.memory_space<vmem>>, vector<2x1xf32>,
    } else {
    }
    return
  }
  func.func @transform_0(%arg0: i32, %arg1: i32) -> (i32, i32, i32) {
    %c0_i32 = arith.constant 0 : i32
    %c0_i32_0 = arith.constant 0 : i32
    return %arg0, %arg1, %c0_i32 : i32, i32, i32
  }
  func.func @transform_1(%arg0: i32, %arg1: i32) -> (i32, i32) {
    %c0_i32 = arith.constant 0 : i32
    %c0_i32_0 = arith.constant 0 : i32
    %c0_i32_1 = arith.constant 0 : i32
    return %c0_i32, %c0_i32_0 : i32, i32
  }
  func.func @transform_2(%arg0: i32, %arg1: i32) -> (i32, i32) {
    %c0_i32 = arith.constant 0 : i32
    %c0_i32_0 = arith.constant 0 : i32
    %c0_i32_1 = arith.constant 0 : i32
    return %c0_i32, %c0_i32_0 : i32, i32
  }
  func.func @transform_3(%arg0: i32, %arg1: i32) -> (i32, i32) {
    %c0_i32 = arith.constant 0 : i32
    %c0_i32_0 = arith.constant 0 : i32
    %c0_i32_1 = arith.constant 0 : i32
    return %c0_i32, %c0_i32_0 : i32, i32
  }
  func.func @transform_4(%arg0: i32, %arg1: i32) -> (i32, i32) {
    %c0_i32 = arith.constant 0 : i32
    %c0_i32_0 = arith.constant 0 : i32
    %c0_i32_1 = arith.constant 0 : i32
    return %c0_i32, %c0_i32_0 : i32, i32
  }
  func.func @transform_5(%arg0: i32, %arg1: i32) -> (i32, i32) {
    %c0_i32 = arith.constant 0 : i32
    %c0_i32_0 = arith.constant 0 : i32
    %c0_i32_1 = arith.constant 0 : i32
    return %c0_i32, %c0_i32_0 : i32, i32
  }
  func.func @transform_6(%arg0: i32, %arg1: i32) -> (i32, i32) {
    %c0_i32 = arith.constant 0 : i32
    %c0_i32_0 = arith.constant 0 : i32
    %c0_i32_1 = arith.constant 0 : i32
    return %c0_i32, %c0_i32_0 : i32, i32
  }
  func.func @transform_7(%arg0: i32, %arg1: i32) -> (i32, i32) {
    %c0_i32 = arith.constant 0 : i32
    %c0_i32_0 = arith.constant 0 : i32
    return %arg0, %c0_i32 : i32, i32
  }
}

</mosaic_0001>

<llo_original>
// kernel: tpu_custom_call.1
$region0: #{tpu_custom_call.1}
  #allocation0 [shape = 'u32[]', space=smem, size = 0x4, offset = 0x4, fixed_abs, tag = 'smem constant byte address 0x4 - core index']
  #allocation1 [shape = 'u32[144,128]{1,0:T(1,128)}', space=vmem, size = 0x12000, scoped, tag = 'internal scratch']
  #allocation2 [shape = 'f32[2,8,32]{2,1,0:T(8,128)}', space=vmem, size = 0x2000, scoped, tag = 'scratch operand']
  #allocation3 [shape = 'f32[1,1]{1,0:T(1,128)S(1)}', space=vmem, size = 0x200, scoped, tag = 'scoped memory for tpu_custom_call.1']
  %s0 = inlined_call_operand.hbm [shape: f32[2,8,32], index: 0, kind: input, shape index: {}]
  %s1 = inlined_call_operand.hbm [shape: f32[32,32], index: 1, kind: input, shape index: {}]
  %s2 = inlined_call_operand.vmem [shape: f32[1,32], index: 2, kind: input, shape index: {}]
  %s3 = inlined_call_operand.hbm [shape: f32[32,32], index: 3, kind: input, shape index: {}]
  %s4 = inlined_call_operand.vmem [shape: f32[1,32], index: 4, kind: input, shape index: {}]
  %s5 = inlined_call_operand.vmem [shape: f32[1,32], index: 5, kind: input, shape index: {}]
  %s6 = inlined_call_operand.<no memory space> [shape: f32[1,1], index: 6, kind: input, shape index: {}]
  %s7 = inlined_call_operand.vmem [shape: f32[2,1], index: 7, kind: output, shape index: {}]
  %s8 = sld [smem:[#allocation0]]
  $region58: #{tpu_custom_call.1} parent=0
    _
  %s10 = ssub.s32 1, %s8
  %s11 = scalar_select 0, %s10, %s8
  %v12 = vstv %s6
  %13 = vst [vmem:[#allocation3] sm:$0x1] %v12
  $region1: #{tpu_custom_call.1} parent=0
    #allocation4 [shape = 'u8[8192]{0}', space=vmem, size = 0x2000, scoped, tag = 'input window, operand 0, single buffered']
    #allocation5 [shape = 's32[1]{0}', space=sflag, size = 0x4, scoped, tag = 'scoped memory for tpu_custom_call.1']
    #allocation6 [shape = 'u8[16384]{0}', space=vmem, size = 0x4000, scoped, tag = 'input window, operand 1, single buffered']
    #allocation7 [shape = 's32[1]{0}', space=sflag, size = 0x4, scoped, tag = 'scoped memory for tpu_custom_call.1']
    #allocation8 [shape = 'u8[16384]{0}', space=vmem, size = 0x4000, scoped, tag = 'input window, operand 3, single buffered']
    %14 = vsyncpa [#allocation5], 0
    %15 = vsyncpa [#allocation7], 0
    // Predicated region
    $region2: #{tpu_custom_call.1} parent=1 // pred_check
      _
    $region3: #{tpu_custom_call.1} parent=1 // pred_check_branch
      %17 = sbr.rel (0) target = $region5
    $region4: #{tpu_custom_call.1} parent=1 // pred_region
      %s19 = ssub.s32 256, 256
      %20 = vsyncadd [#allocation5], %s19
      %s21 = sshll.u32 [#allocation4], 4
      %s22 = int_to_ptr.vmem [resolvable:$true] %s21
      %27 = dma.hbm_to_vmem [thread:$0]  %s0, 256, %s22, [#allocation5], 128, 128, 8
    $region5: #{tpu_custom_call.1} parent=1 // pred_fallthru
      _
    // Predicated region
    $region6: #{tpu_custom_call.1} parent=1 // pred_check
      _
    $region7: #{tpu_custom_call.1} parent=1 // pred_check_branch
      %29 = sbr.rel (0) target = $region9
    $region8: #{tpu_custom_call.1} parent=1 // pred_region
      %s31 = ssub.s32 512, 512
      %32 = vsyncadd [#allocation7], %s31
      %s33 = sshll.u32 [#allocation6], 4
      %s34 = int_to_ptr.vmem [resolvable:$true] %s33
      %39 = dma.hbm_to_vmem [thread:$0]  %s1, 512, %s34, [#allocation7], 128, 128, 8
    $region9: #{tpu_custom_call.1} parent=1 // pred_fallthru
      _
    // Predicated region
    $region10: #{tpu_custom_call.1} parent=1 // pred_check
      _
    $region11: #{tpu_custom_call.1} parent=1 // pred_check_branch
      %41 = sbr.rel (0) target = $region13
    $region12: #{tpu_custom_call.1} parent=1 // pred_region
      _
    $region13: #{tpu_custom_call.1} parent=1 // pred_fallthru
      _
    // Predicated region
    $region14: #{tpu_custom_call.1} parent=1 // pred_check
      _
    $region15: #{tpu_custom_call.1} parent=1 // pred_check_branch
      %43 = sbr.rel (0) target = $region17
    $region16: #{tpu_custom_call.1} parent=1 // pred_region
      %s45 = ssub.s32 512, 512
      %46 = vsyncadd [#allocation7], %s45
      %s47 = sshll.u32 [#allocation8], 4
      %s48 = int_to_ptr.vmem [resolvable:$true] %s47
      %53 = dma.hbm_to_vmem [thread:$0]  %s3, 512, %s48, [#allocation7], 128, 128, 8
    $region17: #{tpu_custom_call.1} parent=1 // pred_fallthru
      _
    // Predicated region
    $region18: #{tpu_custom_call.1} parent=1 // pred_check
      _
    $region19: #{tpu_custom_call.1} parent=1 // pred_check_branch
      %55 = sbr.rel (0) target = $region21
    $region20: #{tpu_custom_call.1} parent=1 // pred_region
      _
    $region21: #{tpu_custom_call.1} parent=1 // pred_fallthru
      _
    // Predicated region
    $region22: #{tpu_custom_call.1} parent=1 // pred_check
      _
    $region23: #{tpu_custom_call.1} parent=1 // pred_check_branch
      %57 = sbr.rel (0) target = $region25
    $region24: #{tpu_custom_call.1} parent=1 // pred_region
      _
    $region25: #{tpu_custom_call.1} parent=1 // pred_fallthru
      _
    // Predicated region
    $region26: #{tpu_custom_call.1} parent=1 // pred_check
      _
    $region27: #{tpu_custom_call.1} parent=1 // pred_check_branch
      %59 = sbr.rel (0) target = $region29
    $region28: #{tpu_custom_call.1} parent=1 // pred_region
      _
    $region29: #{tpu_custom_call.1} parent=1 // pred_fallthru
      _
    // Predicated region
    $region30: #{tpu_custom_call.1} parent=1 // pred_check
      _
    $region31: #{tpu_custom_call.1} parent=1 // pred_check_branch
      %61 = sbr.rel (0) target = $region33
    $region32: #{tpu_custom_call.1} parent=1 // pred_region
      %62 = dma.done [#allocation5], 256
    $region33: #{tpu_custom_call.1} parent=1 // pred_fallthru
      _
    // Predicated region
    $region34: #{tpu_custom_call.1} parent=1 // pred_check
      _
    $region35: #{tpu_custom_call.1} parent=1 // pred_check_branch
      %64 = sbr.rel (0) target = $region37
    $region36: #{tpu_custom_call.1} parent=1 // pred_region
      %65 = dma.done [#allocation7], 512
    $region37: #{tpu_custom_call.1} parent=1 // pred_fallthru
      _
    // Predicated region
    $region38: #{tpu_custom_call.1} parent=1 // pred_check
      _
    $region39: #{tpu_custom_call.1} parent=1 // pred_check_branch
      %67 = sbr.rel (0) target = $region41
    $region40: #{tpu_custom_call.1} parent=1 // pred_region
      %68 = dma.done [#allocation7], 512
    $region41: #{tpu_custom_call.1} parent=1 // pred_fallthru
      _
    %p69 = scmp.eq.s32.totalorder 0, 0
    // Predicated region
    $region42: #{tpu_custom_call.1} parent=1 // pred_check
      %p70 = pneg %p69
    $region43: #{tpu_custom_call.1} parent=1 // pred_check_branch
      %72 = sbr.rel (%p70) target = $region45
    $region44: #{tpu_custom_call.1} parent=1 // pred_region
      %vm73 = vcmask 261120
      %74 = vst.msk [vmem:[#allocation2] sm:$0xff] %vm73, 0.0
      %75 = vst.msk [vmem:[#allocation2 + $0x8] sm:$0xff] %vm73, 0.0
    $region45: #{tpu_custom_call.1} parent=1 // pred_fallthru
      _
    %v76 = vld [vmem:[#allocation4] sm:$0xff]
    %v77 = vld [vmem:[#allocation4 + $0x8] sm:$0xff]
    %v78 = vld [vmem:[#allocation2] sm:$0xff]
    %v79 = vld [vmem:[#allocation2 + $0x8] sm:$0xff]
    %v80 = vadd.f32 %v76, 0.0
    %v81 = vadd.f32 %v77, 0.0
    %v82 = vadd.f32 %v78, %v80
    %v83 = vadd.f32 %v79, %v81
    %vm84 = vcmask 261120
    %85 = vst.msk [vmem:[#allocation2] sm:$0xff] %vm84, %v82
    %86 = vst.msk [vmem:[#allocation2 + $0x8] sm:$0xff] %vm84, %v83
    // Predicated region
    $region46: #{tpu_custom_call.1} parent=1 // pred_check
      %p87 = pneg %p69
    $region47: #{tpu_custom_call.1} parent=1 // pred_check_branch
      %89 = sbr.rel (%p87) target = $region49
    $region48: #{tpu_custom_call.1} parent=1 // pred_region
      %v90 = vld [vmem:[#allocation2] sm:$0xff]
      %v91 = vld [vmem:[#allocation2 + $0x8] sm:$0xff]
      %v92 = vsel %vm84, %v90, 0.0
      %v93 = vrot.slane %v92, 4
      %v94 = vadd.f32 %v92, %v93
      %v95 = vrot.slane %v94, 2
      %v96 = vadd.f32 %v94, %v95
      %v97 = vrot.slane %v96, 1
      %v98 = vadd.f32 %v96, %v97
      %v99 = vsel %vm84, %v91, 0.0
      %v100 = vrot.slane %v99, 4
      %v101 = vadd.f32 %v99, %v100
      %v102 = vrot.slane %v101, 2
      %v103 = vadd.f32 %v101, %v102
      %v104 = vrot.slane %v103, 1
      %v105 = vadd.f32 %v103, %v104
      %v106 = vmul.f32 %v98, 0.125
      %v107 = vmul.f32 %v105, 0.125
      %v108 = vld [vmem:[#allocation6] sm:$0xff]
      %v109 = vld [vmem:[#allocation6 + $0x8] sm:$0xff]
      %v110 = vld [vmem:[#allocation6 + $0x10] sm:$0xff]
      %v111 = vld [vmem:[#allocation6 + $0x18] sm:$0xff]
      %v112 = vld [vmem:[%s2] sm:$0x1]
      %v114 = vlaneseq
      %v115 = vshrl.u32 %v114, 7
      %v116 = vsub.s32 0, %v115
      %v117 = vrot.slane %v112, %v116
      %vm121 = vcmask 1041409
      %v122 = vsel %vm121, %v107, %v106
      %v123 = vsel %vm84, %v122, 0
      %125 = vmatprep.subr.mxu0 0.0
      %126 = vmatpush1.msra.mxu0 %v108
      %127 = vmatprep.subr.mxu0 0.0
      %128 = vmatpush1.msra.mxu0 %v109
      %129 = vmatprep.subr.mxu0 0.0
      %130 = vmatpush1.msra.mxu0 %v110
      %131 = vmatprep.subr.mxu0 0.0
      %132 = vmatpush1.msra.mxu0 %v111
      %133 = vmatprep.subr.mxu0 0.0
      %134 = vmatpush1.msra.mxu0 0.0
      %135 = vmatprep.subr.mxu0 0.0
      %136 = vmatpush1.msra.mxu0 0.0
      %137 = vmatprep.subr.mxu0 0.0
      %138 = vmatpush1.msra.mxu0 0.0
      %139 = vmatprep.subr.mxu0 0.0
      %140 = vmatpush1.msra.mxu0 0.0
      %141 = vmatprep.subr.mxu0 0.0
      %142 = vmatpush1.msra.mxu0 0.0
      %143 = vmatprep.subr.mxu0 0.0
      %144 = vmatpush1.msra.mxu0 0.0
      %145 = vmatprep.subr.mxu0 0.0
      %146 = vmatpush1.msra.mxu0 0.0
      %147 = vmatprep.subr.mxu0 0.0
      %148 = vmatpush1.msra.mxu0 0.0
      %149 = vmatprep.subr.mxu0 0.0
      %150 = vmatpush1.msra.mxu0 0.0
      %151 = vmatprep.subr.mxu0 0.0
      %152 = vmatpush1.msra.mxu0 0.0
      %153 = vmatprep.subr.mxu0 0.0
      %154 = vmatpush1.msra.mxu0 0.0
      %155 = vmatprep.subr.mxu0 0.0
      %156 = vmatpush1.msra.mxu0 0.0
      %157 = vmatprep.subr.mxu0 0.0
      %158 = vmatpush1.msra.mxu0 0.0
      %159 = vmatprep.subr.mxu0 0.0
      %160 = vmatpush1.msra.mxu0 0.0
      %161 = vmatprep.subr.mxu0 0.0
      %162 = vmatpush1.msra.mxu0 0.0
      %163 = vmatprep.subr.mxu0 0.0
      %164 = vmatpush1.msra.mxu0 0.0
      %165 = vmatprep.subr.mxu0 0.0
      %166 = vmatpush1.msra.mxu0 0.0
      %167 = vmatprep.subr.mxu0 0.0
      %168 = vmatpush1.msra.mxu0 0.0
      %169 = vmatprep.subr.mxu0 0.0
      %170 = vmatpush1.msra.mxu0 0.0
      %171 = vmatprep.subr.mxu0 0.0
      %172 = vmatpush1.msra.mxu0 0.0
      %173 = vmatprep.subr.mxu0 0.0
      %174 = vmatpush1.msra.mxu0 0.0
      %175 = vmatprep.subr.mxu0 0.0
      %176 = vmatpush1.msra.mxu0 0.0
      %177 = vmatprep.subr.mxu0 0.0
      %178 = vmatpush1.msra.mxu0 0.0
      %179 = vmatprep.subr.mxu0 0.0
      %180 = vmatpush1.msra.mxu0 0.0
      %181 = vmatprep.subr.mxu0 0.0
      %182 = vmatpush1.msra.mxu0 0.0
      %183 = vmatprep.subr.mxu0 0.0
      %184 = vmatpush1.msra.mxu0 0.0
      %185 = vmatprep.subr.mxu0 0.0
      %186 = vmatpush1.msra.mxu0 0.0
      %187 = vmatprep.subr.mxu0 0.0
      %188 = vmatpush1.msra.mxu0 0.0
      %189 = vmatprep.mubr.f32.mxu0 0.0
      %190 = vmatmul.mubr.f32.gmra.mrb[0].mxu0 %v123
      %v191 = vpop.f32.mrb[0].mxu0
      %v192 = vadd.f32 %v117, %v191
      %v193 = vpop.f32.mrb[0].mxu0
      %194 = vdwg.mxu0
      %v195 = vmax.f32 %v192, 0.0
      %v196 = vld [vmem:[#allocation8] sm:$0xff]
      %v197 = vld [vmem:[#allocation8 + $0x8] sm:$0xff]
      %v198 = vld [vmem:[#allocation8 + $0x10] sm:$0xff]
      %v199 = vld [vmem:[#allocation8 + $0x18] sm:$0xff]
      %v200 = vld [vmem:[%s4] sm:$0x1]
      %v202 = vlaneseq
      %v203 = vshrl.u32 %v202, 7
      %v204 = vsub.s32 0, %v203
      %v205 = vrot.slane %v200, %v204
      %v208 = vsel %vm84, %v195, 0
      %210 = vmatprep.subr.mxu0 0.0
      %211 = vmatpush1.msra.mxu0 %v196
      %212 = vmatprep.subr.mxu0 0.0
      %213 = vmatpush1.msra.mxu0 %v197
      %214 = vmatprep.subr.mxu0 0.0
      %215 = vmatpush1.msra.mxu0 %v198
      %216 = vmatprep.subr.mxu0 0.0
      %217 = vmatpush1.msra.mxu0 %v199
      %218 = vmatprep.subr.mxu0 0.0
      %219 = vmatpush1.msra.mxu0 0.0
      %220 = vmatprep.subr.mxu0 0.0
      %221 = vmatpush1.msra.mxu0 0.0
      %222 = vmatprep.subr.mxu0 0.0
      %223 = vmatpush1.msra.mxu0 0.0
      %224 = vmatprep.subr.mxu0 0.0
      %225 = vmatpush1.msra.mxu0 0.0
      %226 = vmatprep.subr.mxu0 0.0
      %227 = vmatpush1.msra.mxu0 0.0
      %228 = vmatprep.subr.mxu0 0.0
      %229 = vmatpush1.msra.mxu0 0.0
      %230 = vmatprep.subr.mxu0 0.0
      %231 = vmatpush1.msra.mxu0 0.0
      %232 = vmatprep.subr.mxu0 0.0
      %233 = vmatpush1.msra.mxu0 0.0
      %234 = vmatprep.subr.mxu0 0.0
      %235 = vmatpush1.msra.mxu0 0.0
      %236 = vmatprep.subr.mxu0 0.0
      %237 = vmatpush1.msra.mxu0 0.0
      %238 = vmatprep.subr.mxu0 0.0
      %239 = vmatpush1.msra.mxu0 0.0
      %240 = vmatprep.subr.mxu0 0.0
      %241 = vmatpush1.msra.mxu0 0.0
      %242 = vmatprep.subr.mxu0 0.0
      %243 = vmatpush1.msra.mxu0 0.0
      %244 = vmatprep.subr.mxu0 0.0
      %245 = vmatpush1.msra.mxu0 0.0
      %246 = vmatprep.subr.mxu0 0.0
      %247 = vmatpush1.msra.mxu0 0.0
      %248 = vmatprep.subr.mxu0 0.0
      %249 = vmatpush1.msra.mxu0 0.0
      %250 = vmatprep.subr.mxu0 0.0
      %251 = vmatpush1.msra.mxu0 0.0
      %252 = vmatprep.subr.mxu0 0.0
      %253 = vmatpush1.msra.mxu0 0.0
      %254 = vmatprep.subr.mxu0 0.0
      %255 = vmatpush1.msra.mxu0 0.0
      %256 = vmatprep.subr.mxu0 0.0
      %257 = vmatpush1.msra.mxu0 0.0
      %258 = vmatprep.subr.mxu0 0.0
      %259 = vmatpush1.msra.mxu0 0.0
      %260 = vmatprep.subr.mxu0 0.0
      %261 = vmatpush1.msra.mxu0 0.0
      %262 = vmatprep.subr.mxu0 0.0
      %263 = vmatpush1.msra.mxu0 0.0
      %264 = vmatprep.subr.mxu0 0.0
      %265 = vmatpush1.msra.mxu0 0.0
      %266 = vmatprep.subr.mxu0 0.0
      %267 = vmatpush1.msra.mxu0 0.0
      %268 = vmatprep.subr.mxu0 0.0
      %269 = vmatpush1.msra.mxu0 0.0
      %270 = vmatprep.subr.mxu0 0.0
      %271 = vmatpush1.msra.mxu0 0.0
      %272 = vmatprep.subr.mxu0 0.0
      %273 = vmatpush1.msra.mxu0 0.0
      %274 = vmatprep.mubr.f32.mxu0 0.0
      %275 = vmatmul.mubr.f32.gmra.mrb[0].mxu0 %v208
      %v276 = vpop.f32.mrb[0].mxu0
      %v277 = vadd.f32 %v205, %v276
      %v278 = vpop.f32.mrb[0].mxu0
      %279 = vdwg.mxu0
      %v280 = vmax.f32 %v277, 0.0
      %v281 = vld [vmem:[%s5] sm:$0x1]
      %v283 = vlaneseq
      %v284 = vshrl.u32 %v283, 7
      %v285 = vsub.s32 0, %v284
      %v286 = vrot.slane %v281, %v285
      %v288 = vmul.f32 %v280, %v286
      %vm289 = vcmask 254976
      %v290 = vsel %vm289, %v288, 0.0
      %291 = vadd.xlane.f32.xlu0 %v290
      %v292 = vpop.xlane.xlu0 %291
      %v293 = vld [vmem:[#allocation3] sm:$0x1]
      %v295 = vlaneseq
      %v296 = vshrl.u32 %v295, 7
      %v297 = vsub.s32 0, %v296
      %v298 = vrot.slane %v293, %v297
      %v300 = vadd.f32 %v292, %v298
      %vm301 = vcmask 1024
      %302 = vst.msk [vmem:[%s7] sm:$0x3] %vm301, %v300
    $region49: #{tpu_custom_call.1} parent=1 // pred_fallthru
      _
    // Predicated region
    $region50: #{tpu_custom_call.1} parent=1 // pred_check
      _
    $region51: #{tpu_custom_call.1} parent=1 // pred_check_branch
      %304 = sbr.rel (0) target = $region53
    $region52: #{tpu_custom_call.1} parent=1 // pred_region
      _
    $region53: #{tpu_custom_call.1} parent=1 // pred_fallthru
      _
    // Predicated region
    $region54: #{tpu_custom_call.1} parent=1 // pred_check
      _
    $region55: #{tpu_custom_call.1} parent=1 // pred_check_branch
      %306 = sbr.rel (0) target = $region57
    $region56: #{tpu_custom_call.1} parent=1 // pred_region
      _
    $region57: #{tpu_custom_call.1} parent=1 // pred_fallthru
      _
    %307 = vsyncpa [#allocation5], 1
    %308 = vsyncpa [#allocation7], 1

</llo_original>
